<compile_context>
chip_gen: v7x
topology: tpu7x:2x2x1
jax: 0.10.0
libtpu: 0.0.40
codegen_flags: <defaults>
</compile_context>

<pallas_src>
import functools

import jax
import jax.numpy as jnp
from jax import lax
from jax.experimental import pallas as pl
from jax.experimental.pallas import tpu as pltpu


def dws_conv_kernel(x_ref, dw_ref, pw_ref, pb_ref, o_ref, *, k, W, compute_dtype):
    """One grid step processes nb images.

    x_ref:  (nb*C,    H*W)   flattened images, channel rows packed along sublanes
    dw_ref: (nb*C,    k*k)   per-row depthwise taps (dconv weight tiled nb times)
    pw_ref: (nb*Cout, nb*C)  block-diagonal pointwise weight (one MXU matmul)
    pb_ref: (nb*Cout, 1)     fused bias (pw @ db + pb, tiled nb times), f32
    o_ref:  (nb*Cout, H*W)   output rows, stored in x.dtype
    """
    HW = x_ref.shape[-1]
    x = x_ref[...].astype(compute_dtype)          # (nb*C, HW) lane-dense slab
    dw = dw_ref[...].astype(compute_dtype)        # (nb*C, k*k)

    # Depthwise "valid" k x k stencil: tap (di, dj) == lane-roll by di*W + dj.
    # Rolls go to the XLU slot and co-issue with the VALU multiply-adds; wrapped
    # lanes only land on columns with h >= Ho or w >= Wo, which the wrapper crops.
    acc = x * dw[:, 0:1]                          # tap (0, 0): no shift
    for di in range(k):                           # k is static -> fully unrolled
        for dj in range(k):
            if di == 0 and dj == 0:
                continue
            s = di * W + dj
            shifted = pltpu.roll(x, (HW - s) % HW, axis=1)   # shifted[., p] = x[., p+s]
            t = di * k + dj
            acc = acc + shifted * dw[:, t:t + 1]

    # Pointwise 1x1 conv for ALL nb images in one MXU matmul (block-diagonal
    # weight); the depthwise bias is already folded into pb_ref by the wrapper.
    out = jnp.dot(pw_ref[...].astype(compute_dtype), acc,
                  preferred_element_type=jnp.float32)        # (nb*Cout, HW) f32
    o_ref[...] = (out + pb_ref[...]).astype(o_ref.dtype)


def _tpu_config():
    """Per-generation compute dtype, block budget, scoped-VMEM limit, min grid steps."""
    kind = ""
    try:
        kind = jax.devices()[0].device_kind.lower()
    except Exception:
        pass
    is_v7 = ("v7" in kind) or ("7x" in kind)
    is_v6 = "v6" in kind
    is_v5e = ("v5e" in kind) or ("v5 lite" in kind) or ("v5lite" in kind)

    if is_v7:       # 64 MiB VMEM / TC, 2 TCs, bf16 VALU+MXU
        cfg = dict(compute_dtype=jnp.bfloat16, block_budget=8 << 20,
                   vmem_limit=48 << 20, min_steps=4)
    elif is_v6:     # 128 MiB VMEM, bf16 VALU+MXU
        cfg = dict(compute_dtype=jnp.bfloat16, block_budget=20 << 20,
                   vmem_limit=96 << 20, min_steps=2)
    elif is_v5e:    # 128 MiB VMEM, no bf16 VPU -> keep f32 elementwise path
        cfg = dict(compute_dtype=jnp.float32, block_budget=20 << 20,
                   vmem_limit=96 << 20, min_steps=2)
    else:           # unknown generation: conservative f32 path
        cfg = dict(compute_dtype=jnp.float32, block_budget=8 << 20,
                   vmem_limit=48 << 20, min_steps=2)
    try:            # never ask for more than ~75% of physical VMEM
        phys = pltpu.get_tpu_info().vmem_capacity_bytes
        cfg["vmem_limit"] = min(cfg["vmem_limit"], int(phys) * 3 // 4)
    except Exception:
        pass
    return cfg


def _pick_batch_tile(N, C, Cout, HW, in_bytes, out_bytes, cbytes,
                     budget_bytes, min_steps, max_nb=16):
    """Images per grid step.  Accounts for double-buffered I/O blocks AND the
    in-kernel temporaries; keeps the (8,128) sublane rule satisfied; prefers
    >= min_steps grid steps so the pipeline (and both v7x cores) stay busy."""

    def per_step_bytes(nb):
        blk_in = 2 * nb * C * HW * in_bytes        # double-buffered input block
        blk_out = 2 * nb * Cout * HW * out_bytes   # double-buffered output block
        tmps = 3 * nb * C * HW * cbytes            # x / shifted / acc live slabs
        mm = nb * Cout * HW * 4                    # f32 matmul result before cast
        return blk_in + blk_out + tmps + mm

    def layout_ok(nb):
        return (((nb * C) % 8 == 0) or nb == N) and (((nb * Cout) % 8 == 0) or nb == N)

    divisors = [d for d in range(1, N + 1) if N % d == 0]
    candidates = [d for d in divisors if d <= max_nb and layout_ok(d)]
    if not candidates:                              # any layout-legal divisor at all
        candidates = [d for d in divisors if layout_ok(d)] or [N]
    fitting = [d for d in candidates if per_step_bytes(d) <= budget_bytes]
    if not fitting:                                 # nothing fits: smallest footprint
        return min(candidates)
    pipelined = [d for d in fitting if N // d >= min_steps]
    return max(pipelined) if pipelined else max(fitting)


def dws_conv(x, dw, db, pw, pb, *, nb=None):
    """x: (N, C, H, W); dw: (C, 1, k, k); db: (C,); pw: (Cout, C, 1, 1); pb: (Cout,)."""
    N, C, H, W = x.shape
    Cout = pw.shape[0]
    k = dw.shape[-1]
    Ho, Wo = H - k + 1, W - k + 1
    HW = H * W

    cfg = _tpu_config()
    compute_dtype = cfg["compute_dtype"]
    itemsize = jnp.dtype(x.dtype).itemsize
    cbytes = jnp.dtype(compute_dtype).itemsize

    if nb is None:
        nb = _pick_batch_tile(N, C, Cout, HW, itemsize, itemsize, cbytes,
                              cfg["block_budget"], cfg["min_steps"])
    assert N % nb == 0

    # --- layout plumbing: FREE reshapes only (x is contiguous NCHW) ------------
    x2 = x.reshape(N * C, HW)                                   # (N*C, H*W)
    dw2 = dw.reshape(C, k * k)
    dwt = jnp.tile(dw2, (nb, 1))                                # (nb*C, k*k)
    pw2 = pw.reshape(Cout, C).astype(jnp.float32)
    # Fold depthwise bias into pointwise bias: pconv(d(x)+db) = pw@d(x) + (pw@db+pb).
    pbf = pw2 @ db.astype(jnp.float32) + pb.astype(jnp.float32)  # (Cout,)
    # Block-diagonal pointwise weight: one matmul covers all nb images per step.
    pw_big = jnp.kron(jnp.eye(nb, dtype=jnp.float32), pw2)      # (nb*Cout, nb*C)
    pb_big = jnp.tile(pbf.reshape(Cout, 1), (nb, 1))            # (nb*Cout, 1)

    grid = (N // nb,)
    out_flat = pl.pallas_call(
        functools.partial(dws_conv_kernel, k=k, W=W, compute_dtype=compute_dtype),
        out_shape=jax.ShapeDtypeStruct((N * Cout, HW), x.dtype),   # store in x.dtype
        grid=grid,
        in_specs=[
            pl.BlockSpec((nb * C, HW), lambda n: (n, 0)),
            pl.BlockSpec((nb * C, k * k), lambda n: (0, 0)),
            pl.BlockSpec((nb * Cout, nb * C), lambda n: (0, 0)),
            pl.BlockSpec((nb * Cout, 1), lambda n: (0, 0)),
        ],
        out_specs=pl.BlockSpec((nb * Cout, HW), lambda n: (n, 0)),
        compiler_params=pltpu.CompilerParams(
            dimension_semantics=("parallel",),
            vmem_limit_bytes=cfg["vmem_limit"],
        ),
    )(x2, dwt, pw_big, pb_big)

    # Free reshape + crop to the VALID window (wrapped depthwise columns discarded).
    return out_flat.reshape(N, Cout, H, W)[:, :, :Ho, :Wo]


def dws_conv_ref(x, dw, db, pw, pb):
    """Plain-JAX reference matching PyTorch semantics (validation only)."""
    C = x.shape[1]
    y = lax.conv_general_dilated(
        x, dw, window_strides=(1, 1), padding="VALID",
        dimension_numbers=("NCHW", "OIHW", "NCHW"),
        feature_group_count=C,
    ) + db[None, :, None, None]
    z = lax.conv_general_dilated(
        y, pw, window_strides=(1, 1), padding="VALID",
        dimension_numbers=("NCHW", "OIHW", "NCHW"),
    ) + pb[None, :, None, None]
    return z


if __name__ == "__main__":
    # Small shapes consistent with DwsConv(in_channels=4, out_channels=8, kernel_size=3)
    N, C, H, W = 2, 4, 16, 16
    Cout, k = 8, 3

    key = jax.random.PRNGKey(0)
    kx, kdw, kdb, kpw, kpb = jax.random.split(key, 5)

    x = jax.random.normal(kx, (N, C, H, W), dtype=jnp.float32)
    dw = 0.2 * jax.random.normal(kdw, (C, 1, k, k), dtype=jnp.float32)     # depthwise weight
    db = 0.1 * jax.random.normal(kdb, (C,), dtype=jnp.float32)             # depthwise bias
    pw = 0.2 * jax.random.normal(kpw, (Cout, C, 1, 1), dtype=jnp.float32)  # pointwise weight
    pb = 0.1 * jax.random.normal(kpb, (Cout,), dtype=jnp.float32)          # pointwise bias

    out = jax.block_until_ready(dws_conv(x, dw, db, pw, pb))
    ref = jax.block_until_ready(dws_conv_ref(x, dw, db, pw, pb))

    assert out.shape == (N, Cout, H - k + 1, W - k + 1), out.shape
    assert out.dtype == x.dtype, out.dtype
    # bf16 compute path (v6e/v7x) needs a looser tolerance than the pure-f32 path.
    bf16_path = _tpu_config()["compute_dtype"] == jnp.bfloat16
    tol = 3e-2 if bf16_path else 1e-4
    err = float(jnp.abs(out.astype(jnp.float32) - ref).max())
    assert jnp.allclose(out.astype(jnp.float32), ref, atol=tol, rtol=tol), err

    print("KERNEL_OK")
</pallas_src>

<mosaic_0001>
module attributes {stable_mosaic.version = 11 : i64} {
  func.func @dws_conv_kernel(%arg0: i32, %arg1: memref<8x256xf32, #tpu.memory_space<vmem>>, %arg2: memref<8x9xf32, #tpu.memory_space<vmem>>, %arg3: memref<16x8xf32, #tpu.memory_space<vmem>>, %arg4: memref<16x1xf32, #tpu.memory_space<vmem>>, %arg5: memref<16x256xf32, #tpu.memory_space<vmem>>) attributes {dimension_semantics = [#tpu.dimension_semantics<parallel>], iteration_bounds = array<i64: 1>, scalar_prefetch = 0 : i64, scratch_operands = 0 : i64, tpu.core_type = #tpu.core_type<tc>, window_params = [{transform_indices = @transform_0, window_bounds = array<i64: 8, 256>}, {pipeline_mode = #tpu.pipeline_mode<synchronous>, transform_indices = @transform_1, window_bounds = array<i64: 8, 9>}, {pipeline_mode = #tpu.pipeline_mode<synchronous>, transform_indices = @transform_2, window_bounds = array<i64: 16, 8>}, {pipeline_mode = #tpu.pipeline_mode<synchronous>, transform_indices = @transform_3, window_bounds = array<i64: 16, 1>}, {transform_indices = @transform_4, window_bounds = array<i64: 16, 256>}]} {
    %c0 = arith.constant 0 : index
    %c0_0 = arith.constant 0 : index
    %0 = vector.load %arg1[%c0, %c0_0] : memref<8x256xf32, #tpu.memory_space<vmem>>, vector<8x256xf32>
    %c0_1 = arith.constant 0 : index
    %c0_2 = arith.constant 0 : index
    %1 = vector.load %arg2[%c0_1, %c0_2] : memref<8x9xf32, #tpu.memory_space<vmem>>, vector<8x9xf32>
    %2 = vector.extract_strided_slice %1 {offsets = [0, 0], sizes = [8, 1], strides = [1, 1]} : vector<8x9xf32> to vector<8x1xf32>
    %3 = vector.broadcast %2 : vector<8x1xf32> to vector<8x256xf32>
    %4 = arith.mulf %0, %3 : vector<8x256xf32>
    %c255_i32 = arith.constant 255 : i32
    %5 = tpu.dynamic_rotate %0 by %c255_i32 dim 1 : vector<8x256xf32>, i32 -> vector<8x256xf32>
    %6 = vector.extract_strided_slice %1 {offsets = [0, 1], sizes = [8, 1], strides = [1, 1]} : vector<8x9xf32> to vector<8x1xf32>
    %7 = vector.broadcast %6 : vector<8x1xf32> to vector<8x256xf32>
    %8 = arith.mulf %5, %7 : vector<8x256xf32>
    %9 = arith.addf %4, %8 : vector<8x256xf32>
    %c254_i32 = arith.constant 254 : i32
    %10 = tpu.dynamic_rotate %0 by %c254_i32 dim 1 : vector<8x256xf32>, i32 -> vector<8x256xf32>
    %11 = vector.extract_strided_slice %1 {offsets = [0, 2], sizes = [8, 1], strides = [1, 1]} : vector<8x9xf32> to vector<8x1xf32>
    %12 = vector.broadcast %11 : vector<8x1xf32> to vector<8x256xf32>
    %13 = arith.mulf %10, %12 : vector<8x256xf32>
    %14 = arith.addf %9, %13 : vector<8x256xf32>
    %c240_i32 = arith.constant 240 : i32
    %15 = tpu.dynamic_rotate %0 by %c240_i32 dim 1 : vector<8x256xf32>, i32 -> vector<8x256xf32>
    %16 = vector.extract_strided_slice %1 {offsets = [0, 3], sizes = [8, 1], strides = [1, 1]} : vector<8x9xf32> to vector<8x1xf32>
    %17 = vector.broadcast %16 : vector<8x1xf32> to vector<8x256xf32>
    %18 = arith.mulf %15, %17 : vector<8x256xf32>
    %19 = arith.addf %14, %18 : vector<8x256xf32>
    %c239_i32 = arith.constant 239 : i32
    %20 = tpu.dynamic_rotate %0 by %c239_i32 dim 1 : vector<8x256xf32>, i32 -> vector<8x256xf32>
    %21 = vector.extract_strided_slice %1 {offsets = [0, 4], sizes = [8, 1], strides = [1, 1]} : vector<8x9xf32> to vector<8x1xf32>
    %22 = vector.broadcast %21 : vector<8x1xf32> to vector<8x256xf32>
    %23 = arith.mulf %20, %22 : vector<8x256xf32>
    %24 = arith.addf %19, %23 : vector<8x256xf32>
    %c238_i32 = arith.constant 238 : i32
    %25 = tpu.dynamic_rotate %0 by %c238_i32 dim 1 : vector<8x256xf32>, i32 -> vector<8x256xf32>
    %26 = vector.extract_strided_slice %1 {offsets = [0, 5], sizes = [8, 1], strides = [1, 1]} : vector<8x9xf32> to vector<8x1xf32>
    %27 = vector.broadcast %26 : vector<8x1xf32> to vector<8x256xf32>
    %28 = arith.mulf %25, %27 : vector<8x256xf32>
    %29 = arith.addf %24, %28 : vector<8x256xf32>
    %c224_i32 = arith.constant 224 : i32
    %30 = tpu.dynamic_rotate %0 by %c224_i32 dim 1 : vector<8x256xf32>, i32 -> vector<8x256xf32>
    %31 = vector.extract_strided_slice %1 {offsets = [0, 6], sizes = [8, 1], strides = [1, 1]} : vector<8x9xf32> to vector<8x1xf32>
    %32 = vector.broadcast %31 : vector<8x1xf32> to vector<8x256xf32>
    %33 = arith.mulf %30, %32 : vector<8x256xf32>
    %34 = arith.addf %29, %33 : vector<8x256xf32>
    %c223_i32 = arith.constant 223 : i32
    %35 = tpu.dynamic_rotate %0 by %c223_i32 dim 1 : vector<8x256xf32>, i32 -> vector<8x256xf32>
    %36 = vector.extract_strided_slice %1 {offsets = [0, 7], sizes = [8, 1], strides = [1, 1]} : vector<8x9xf32> to vector<8x1xf32>
    %37 = vector.broadcast %36 : vector<8x1xf32> to vector<8x256xf32>
    %38 = arith.mulf %35, %37 : vector<8x256xf32>
    %39 = arith.addf %34, %38 : vector<8x256xf32>
    %c222_i32 = arith.constant 222 : i32
    %40 = tpu.dynamic_rotate %0 by %c222_i32 dim 1 : vector<8x256xf32>, i32 -> vector<8x256xf32>
    %41 = vector.extract_strided_slice %1 {offsets = [0, 8], sizes = [8, 1], strides = [1, 1]} : vector<8x9xf32> to vector<8x1xf32>
    %42 = vector.broadcast %41 : vector<8x1xf32> to vector<8x256xf32>
    %43 = arith.mulf %40, %42 : vector<8x256xf32>
    %44 = arith.addf %39, %43 : vector<8x256xf32>
    %c0_3 = arith.constant 0 : index
    %c0_4 = arith.constant 0 : index
    %45 = vector.load %arg3[%c0_3, %c0_4] : memref<16x8xf32, #tpu.memory_space<vmem>>, vector<16x8xf32>
    %cst = arith.constant dense<0.000000e+00> : vector<16x256xf32>
    %46 = tpu.matmul %45, %44, %cst {dimension_numbers = #tpu.dot_dimension_numbers<[1], [0], [0], [1], [0, 0, 1, 1], [], []>} : vector<16x8xf32>, vector<8x256xf32>, vector<16x256xf32> -> vector<16x256xf32>
    %c0_5 = arith.constant 0 : index
    %c0_6 = arith.constant 0 : index
    %47 = vector.load %arg4[%c0_5, %c0_6] : memref<16x1xf32, #tpu.memory_space<vmem>>, vector<16x1xf32>
    %48 = vector.broadcast %47 : vector<16x1xf32> to vector<16x256xf32>
    %49 = arith.addf %46, %48 : vector<16x256xf32>
    %c0_7 = arith.constant 0 : index
    %c0_8 = arith.constant 0 : index
    %50 = vector.load %arg5[%c0_7, %c0_8] : memref<16x256xf32, #tpu.memory_space<vmem>>, vector<16x256xf32>
    tpu.vector_store %arg5[%c0_7, %c0_8], %49 {strides = array<i32>} : memref<16x256xf32, #tpu.memory_space<vmem>>, vector<16x256xf32>,
    return
  }
  func.func @transform_0(%arg0: i32) -> (i32, i32) {
    %c0_i32 = arith.constant 0 : i32
    %c0_i32_0 = arith.constant 0 : i32
    return %arg0, %c0_i32 : i32, i32
  }
  func.func @transform_1(%arg0: i32) -> (i32, i32) {
    %c0_i32 = arith.constant 0 : i32
    %c0_i32_0 = arith.constant 0 : i32
    %c0_i32_1 = arith.constant 0 : i32
    return %c0_i32, %c0_i32_0 : i32, i32
  }
  func.func @transform_2(%arg0: i32) -> (i32, i32) {
    %c0_i32 = arith.constant 0 : i32
    %c0_i32_0 = arith.constant 0 : i32
    %c0_i32_1 = arith.constant 0 : i32
    return %c0_i32, %c0_i32_0 : i32, i32
  }
  func.func @transform_3(%arg0: i32) -> (i32, i32) {
    %c0_i32 = arith.constant 0 : i32
    %c0_i32_0 = arith.constant 0 : i32
    %c0_i32_1 = arith.constant 0 : i32
    return %c0_i32, %c0_i32_0 : i32, i32
  }
  func.func @transform_4(%arg0: i32) -> (i32, i32) {
    %c0_i32 = arith.constant 0 : i32
    %c0_i32_0 = arith.constant 0 : i32
    return %arg0, %c0_i32 : i32, i32
  }
}

</mosaic_0001>

<llo_original>
// kernel: tpu_custom_call.1
$region0: #{tpu_custom_call.1}
  #allocation0 [shape = 'u32[]', space=smem, size = 0x4, offset = 0x4, fixed_abs, tag = 'smem constant byte address 0x4 - core index']
  #allocation1 [shape = 'u32[144,128]{1,0:T(1,128)}', space=vmem, size = 0x12000, scoped, tag = 'internal scratch']
  %s0 = inlined_call_operand.vmem [shape: f32[8,256], index: 0, kind: input, shape index: {}]
  %s1 = inlined_call_operand.vmem [shape: f32[8,9], index: 1, kind: input, shape index: {}]
  %s2 = inlined_call_operand.vmem [shape: f32[16,8], index: 2, kind: input, shape index: {}]
  %s3 = inlined_call_operand.vmem [shape: f32[16,1], index: 3, kind: input, shape index: {}]
  %s4 = inlined_call_operand.hbm [shape: f32[16,256], index: 4, kind: output, shape index: {}]
  %s5 = sld [smem:[#allocation0]]
  $region26: #{tpu_custom_call.1} parent=0
    _
  %s7 = ssub.s32 1, %s5
  %s8 = scalar_select 0, %s7, %s5
  $region1: #{tpu_custom_call.1} parent=0
    #allocation2 [shape = 'u8[16384]{0}', space=vmem, size = 0x4000, scoped, tag = 'output window, operand 0, single buffered']
    #allocation3 [shape = 's32[1]{0}', space=sflag, size = 0x4, scoped, tag = 'scoped memory for tpu_custom_call.1']
    %9 = vsyncpa [#allocation3], 0
    // Predicated region
    $region2: #{tpu_custom_call.1} parent=1 // pred_check
      _
    $region3: #{tpu_custom_call.1} parent=1 // pred_check_branch
      %11 = sbr.rel (0) target = $region5
    $region4: #{tpu_custom_call.1} parent=1 // pred_region
      _
    $region5: #{tpu_custom_call.1} parent=1 // pred_fallthru
      _
    // Predicated region
    $region6: #{tpu_custom_call.1} parent=1 // pred_check
      _
    $region7: #{tpu_custom_call.1} parent=1 // pred_check_branch
      %13 = sbr.rel (0) target = $region9
    $region8: #{tpu_custom_call.1} parent=1 // pred_region
      _
    $region9: #{tpu_custom_call.1} parent=1 // pred_fallthru
      _
    // Predicated region
    $region10: #{tpu_custom_call.1} parent=1 // pred_check
      _
    $region11: #{tpu_custom_call.1} parent=1 // pred_check_branch
      %15 = sbr.rel (0) target = $region13
    $region12: #{tpu_custom_call.1} parent=1 // pred_region
      _
    $region13: #{tpu_custom_call.1} parent=1 // pred_fallthru
      _
    // Predicated region
    $region14: #{tpu_custom_call.1} parent=1 // pred_check
      _
    $region15: #{tpu_custom_call.1} parent=1 // pred_check_branch
      %17 = sbr.rel (0) target = $region17
    $region16: #{tpu_custom_call.1} parent=1 // pred_region
      _
    $region17: #{tpu_custom_call.1} parent=1 // pred_fallthru
      _
    %v18 = vld [vmem:[%s0] sm:$0xff]
    %v19 = vld [vmem:[%s0 + $0x8] sm:$0xff]
    %v20 = vld [vmem:[%s1] sm:$0xff]
    %22 = vset.pattern.permute.xlu0 0
    %23 = vperm.xlu0 %22, %v20
    %v24 = vpop.permute.xlu0 %23
    %v26 = vmul.f32 %v18, %v24
    %v27 = vmul.f32 %v19, %v24
    %28 = vrot.lane.b32.xlu0 %v18, 127
    %v29 = vpop.permute.xlu0 %28
    %30 = vrot.lane.b32.xlu0 %v19, 127
    %v31 = vpop.permute.xlu0 %30
    %v32 = vlaneseq
    %v33 = vand.u32 %v32, 127
    %vm34 = vcmp.lt.s32.totalorder %v33, 127
    %v35 = vsel %vm34, %v29, %v31
    %v36 = vsel %vm34, %v31, %v29
    %37 = vset.pattern.permute.xlu0 1
    %38 = vperm.xlu0 %37, %v20
    %v39 = vpop.permute.xlu0 %38
    %v41 = vmul.f32 %v35, %v39
    %v42 = vmul.f32 %v36, %v39
    %v43 = vadd.f32 %v26, %v41
    %v44 = vadd.f32 %v27, %v42
    %45 = vrot.lane.b32.xlu0 %v18, 126
    %v46 = vpop.permute.xlu0 %45
    %47 = vrot.lane.b32.xlu0 %v19, 126
    %v48 = vpop.permute.xlu0 %47
    %vm49 = vcmp.lt.s32.totalorder %v33, 126
    %v50 = vsel %vm49, %v46, %v48
    %v51 = vsel %vm49, %v48, %v46
    %52 = vset.pattern.permute.xlu0 2
    %53 = vperm.xlu0 %52, %v20
    %v54 = vpop.permute.xlu0 %53
    %v56 = vmul.f32 %v50, %v54
    %v57 = vmul.f32 %v51, %v54
    %v58 = vadd.f32 %v43, %v56
    %v59 = vadd.f32 %v44, %v57
    %60 = vrot.lane.b32.xlu0 %v18, 112
    %v61 = vpop.permute.xlu0 %60
    %62 = vrot.lane.b32.xlu0 %v19, 112
    %v63 = vpop.permute.xlu0 %62
    %vm64 = vcmp.lt.s32.totalorder %v33, 112
    %v65 = vsel %vm64, %v61, %v63
    %v66 = vsel %vm64, %v63, %v61
    %67 = vset.pattern.permute.xlu0 3
    %68 = vperm.xlu0 %67, %v20
    %v69 = vpop.permute.xlu0 %68
    %v71 = vmul.f32 %v65, %v69
    %v72 = vmul.f32 %v66, %v69
    %v73 = vadd.f32 %v58, %v71
    %v74 = vadd.f32 %v59, %v72
    %75 = vrot.lane.b32.xlu0 %v18, 111
    %v76 = vpop.permute.xlu0 %75
    %77 = vrot.lane.b32.xlu0 %v19, 111
    %v78 = vpop.permute.xlu0 %77
    %vm79 = vcmp.lt.s32.totalorder %v33, 111
    %v80 = vsel %vm79, %v76, %v78
    %v81 = vsel %vm79, %v78, %v76
    %82 = vset.pattern.permute.xlu0 4
    %83 = vperm.xlu0 %82, %v20
    %v84 = vpop.permute.xlu0 %83
    %v86 = vmul.f32 %v80, %v84
    %v87 = vmul.f32 %v81, %v84
    %v88 = vadd.f32 %v73, %v86
    %v89 = vadd.f32 %v74, %v87
    %90 = vrot.lane.b32.xlu0 %v18, 110
    %v91 = vpop.permute.xlu0 %90
    %92 = vrot.lane.b32.xlu0 %v19, 110
    %v93 = vpop.permute.xlu0 %92
    %vm94 = vcmp.lt.s32.totalorder %v33, 110
    %v95 = vsel %vm94, %v91, %v93
    %v96 = vsel %vm94, %v93, %v91
    %97 = vset.pattern.permute.xlu0 5
    %98 = vperm.xlu0 %97, %v20
    %v99 = vpop.permute.xlu0 %98
    %v101 = vmul.f32 %v95, %v99
    %v102 = vmul.f32 %v96, %v99
    %v103 = vadd.f32 %v88, %v101
    %v104 = vadd.f32 %v89, %v102
    %105 = vrot.lane.b32.xlu0 %v18, 96
    %v106 = vpop.permute.xlu0 %105
    %107 = vrot.lane.b32.xlu0 %v19, 96
    %v108 = vpop.permute.xlu0 %107
    %vm109 = vcmp.lt.s32.totalorder %v33, 96
    %v110 = vsel %vm109, %v106, %v108
    %v111 = vsel %vm109, %v108, %v106
    %112 = vset.pattern.permute.xlu0 6
    %113 = vperm.xlu0 %112, %v20
    %v114 = vpop.permute.xlu0 %113
    %v116 = vmul.f32 %v110, %v114
    %v117 = vmul.f32 %v111, %v114
    %v118 = vadd.f32 %v103, %v116
    %v119 = vadd.f32 %v104, %v117
    %120 = vrot.lane.b32.xlu0 %v18, 95
    %v121 = vpop.permute.xlu0 %120
    %122 = vrot.lane.b32.xlu0 %v19, 95
    %v123 = vpop.permute.xlu0 %122
    %vm124 = vcmp.lt.s32.totalorder %v33, 95
    %v125 = vsel %vm124, %v121, %v123
    %v126 = vsel %vm124, %v123, %v121
    %127 = vset.pattern.permute.xlu0 7
    %128 = vperm.xlu0 %127, %v20
    %v129 = vpop.permute.xlu0 %128
    %v131 = vmul.f32 %v125, %v129
    %v132 = vmul.f32 %v126, %v129
    %v133 = vadd.f32 %v118, %v131
    %v134 = vadd.f32 %v119, %v132
    %135 = vrot.lane.b32.xlu0 %v18, 94
    %v136 = vpop.permute.xlu0 %135
    %137 = vrot.lane.b32.xlu0 %v19, 94
    %v138 = vpop.permute.xlu0 %137
    %vm139 = vcmp.lt.s32.totalorder %v33, 94
    %v140 = vsel %vm139, %v136, %v138
    %v141 = vsel %vm139, %v138, %v136
    %142 = vset.pattern.permute.xlu0 8
    %143 = vperm.xlu0 %142, %v20
    %v144 = vpop.permute.xlu0 %143
    %v146 = vmul.f32 %v140, %v144
    %v147 = vmul.f32 %v141, %v144
    %v148 = vadd.f32 %v133, %v146
    %v149 = vadd.f32 %v134, %v147
    %v150 = vld [vmem:[%s2] sm:$0xff]
    %v151 = vld [vmem:[%s2 + $0x8] sm:$0xff]
    %v152 = vld [vmem:[%s3] sm:$0xff]
    %v153 = vld [vmem:[%s3 + $0x8] sm:$0xff]
    %155 = vset.pattern.permute.xlu0 0
    %156 = vperm.xlu0 %155, %v152
    %v157 = vpop.permute.xlu0 %156
    %160 = vset.pattern.permute.xlu0 0
    %161 = vperm.xlu0 %160, %v153
    %v162 = vpop.permute.xlu0 %161
    %vm164 = vcmask 64512
    %v166 = vsel %vm164, %v150, 0
    %v169 = vsel %vm164, %v151, 0
    %171 = vmatprep.subr.mxu0 %v149
    %172 = vmatpush1.msra.mxu0 %v148
    %173 = vmatprep.subr.mxu0 0.0
    %174 = vmatpush1.msra.mxu0 0.0
    %175 = vmatprep.subr.mxu0 0.0
    %176 = vmatpush1.msra.mxu0 0.0
    %177 = vmatprep.subr.mxu0 0.0
    %178 = vmatpush1.msra.mxu0 0.0
    %179 = vmatprep.subr.mxu0 0.0
    %180 = vmatpush1.msra.mxu0 0.0
    %181 = vmatprep.subr.mxu0 0.0
    %182 = vmatpush1.msra.mxu0 0.0
    %183 = vmatprep.subr.mxu0 0.0
    %184 = vmatpush1.msra.mxu0 0.0
    %185 = vmatprep.subr.mxu0 0.0
    %186 = vmatpush1.msra.mxu0 0.0
    %187 = vmatprep.subr.mxu0 0.0
    %188 = vmatpush1.msra.mxu0 0.0
    %189 = vmatprep.subr.mxu0 0.0
    %190 = vmatpush1.msra.mxu0 0.0
    %191 = vmatprep.subr.mxu0 0.0
    %192 = vmatpush1.msra.mxu0 0.0
    %193 = vmatprep.subr.mxu0 0.0
    %194 = vmatpush1.msra.mxu0 0.0
    %195 = vmatprep.subr.mxu0 0.0
    %196 = vmatpush1.msra.mxu0 0.0
    %197 = vmatprep.subr.mxu0 0.0
    %198 = vmatpush1.msra.mxu0 0.0
    %199 = vmatprep.subr.mxu0 0.0
    %200 = vmatpush1.msra.mxu0 0.0
    %201 = vmatprep.subr.mxu0 0.0
    %202 = vmatpush1.msra.mxu0 0.0
    %203 = vmatprep.subr.mxu0 0.0
    %204 = vmatpush1.msra.mxu0 0.0
    %205 = vmatprep.subr.mxu0 0.0
    %206 = vmatpush1.msra.mxu0 0.0
    %207 = vmatprep.subr.mxu0 0.0
    %208 = vmatpush1.msra.mxu0 0.0
    %209 = vmatprep.subr.mxu0 0.0
    %210 = vmatpush1.msra.mxu0 0.0
    %211 = vmatprep.subr.mxu0 0.0
    %212 = vmatpush1.msra.mxu0 0.0
    %213 = vmatprep.subr.mxu0 0.0
    %214 = vmatpush1.msra.mxu0 0.0
    %215 = vmatprep.subr.mxu0 0.0
    %216 = vmatpush1.msra.mxu0 0.0
    %217 = vmatprep.subr.mxu0 0.0
    %218 = vmatpush1.msra.mxu0 0.0
    %219 = vmatprep.subr.mxu0 0.0
    %220 = vmatpush1.msra.mxu0 0.0
    %221 = vmatprep.subr.mxu0 0.0
    %222 = vmatpush1.msra.mxu0 0.0
    %223 = vmatprep.subr.mxu0 0.0
    %224 = vmatpush1.msra.mxu0 0.0
    %225 = vmatprep.subr.mxu0 0.0
    %226 = vmatpush1.msra.mxu0 0.0
    %227 = vmatprep.subr.mxu0 0.0
    %228 = vmatpush1.msra.mxu0 0.0
    %229 = vmatprep.subr.mxu0 0.0
    %230 = vmatpush1.msra.mxu0 0.0
    %231 = vmatprep.subr.mxu0 0.0
    %232 = vmatpush1.msra.mxu0 0.0
    %233 = vmatprep.subr.mxu0 0.0
    %234 = vmatpush1.msra.mxu0 0.0
    %235 = vmatprep.mubr.f32.mxu0 0.0
    %236 = vmatmul.mubr.f32.gmra.mrb[0].mxu0 %v166
    %v237 = vpop.f32.mrb[0].mxu0
    %v238 = vadd.f32 %v157, %v237
    %v239 = vpop.f32.mrb[0].mxu0
    %v240 = vadd.f32 %v157, %v239
    %241 = vmatprep.mubr.f32.mxu0 0.0
    %242 = vmatmul.mubr.f32.gmra.mrb[0].mxu0 %v169
    %v243 = vpop.f32.mrb[0].mxu0
    %v244 = vadd.f32 %v162, %v243
    %v245 = vpop.f32.mrb[0].mxu0
    %v246 = vadd.f32 %v162, %v245
    %247 = vdwg.mxu0
    %248 = vst [vmem:[#allocation2] sm:$0xff] %v238
    %249 = vst [vmem:[#allocation2 + $0x8] sm:$0xff] %v240
    %250 = vst [vmem:[#allocation2 + $0x10] sm:$0xff] %v244
    %251 = vst [vmem:[#allocation2 + $0x18] sm:$0xff] %v246
    // Predicated region
    $region18: #{tpu_custom_call.1} parent=1 // pred_check
      _
    $region19: #{tpu_custom_call.1} parent=1 // pred_check_branch
      %253 = sbr.rel (0) target = $region21
    $region20: #{tpu_custom_call.1} parent=1 // pred_region
      %s255 = ssub.s32 512, 512
      %256 = vsyncadd [#allocation3], %s255
      %s257 = sshll.u32 [#allocation2], 4
      %s258 = int_to_ptr.vmem [resolvable:$true] %s257
      %263 = dma.vmem_to_hbm [thread:$0]  %s258, 512, %s4, [#allocation3], 256, 256, 16
    $region21: #{tpu_custom_call.1} parent=1 // pred_fallthru
      _
    // Predicated region
    $region22: #{tpu_custom_call.1} parent=1 // pred_check
      _
    $region23: #{tpu_custom_call.1} parent=1 // pred_check_branch
      %265 = sbr.rel (0) target = $region25
    $region24: #{tpu_custom_call.1} parent=1 // pred_region
      %266 = dma.done [#allocation3], 512
    $region25: #{tpu_custom_call.1} parent=1 // pred_fallthru
      _
    %267 = vsyncpa [#allocation3], 1

</llo_original>
